<compile_context>
chip_gen: v5e
topology: v5e:2x2
jax: 0.10.0
libtpu: 0.0.40
codegen_flags: <defaults>
</compile_context>

<pallas_src>
import jax
import jax.numpy as jnp
from jax.experimental import pallas as pl
from jax.experimental.pallas import tpu as pltpu


def _sap_kernel(x_ref, wt_ref, b_ref, v_ref, out_ref):
    # x_ref  : (b_tile, Tp, D)  batch tile, native DMA dtype (bf16 fast path)
    # wt_ref : (D, H)           attention_linear.weight^T, same dtype as x
    # b_ref  : (1, H)           attention_linear.bias (f32)
    # v_ref  : (1, H)           attention_vector flattened from [H, 1] (f32)
    # out_ref: (b_tile, D)      lane-dense f32 output slab (single store)
    bt, Tp, D = x_ref.shape

    x = x_ref[...]                                  # stays bf16/f32 -- no upcast copy
    xf = x.reshape(bt * Tp, D)                      # layout-free: Tp % sublane_tile == 0

    # fx = sigmoid(x @ W^T + b): one MXU matmul over all b_tile*Tp rows,
    # bf16 operands with f32 accumulation.
    logits = jnp.dot(xf, wt_ref[...], preferred_element_type=jnp.float32) + b_ref[...]
    fx = jax.nn.sigmoid(logits)                     # f32 (bt*Tp, H)  (EUP)

    # vf = fx @ v (v is [H, 1] in torch): VPU multiply + XLU cross-lane reduce.
    vf = jnp.sum(fx * v_ref[...], axis=-1, keepdims=True)      # f32 (bt*Tp, 1)
    alpha = jnp.tanh(vf).reshape(bt, 1, Tp).astype(x.dtype)     # (bt, 1, Tp)

    # Weighted sum over T as a batched (1,Tp)@(Tp,D) matmul with f32
    # accumulation -- no x*alpha full-tile temporary, no f32 copy of x.
    out = jnp.einsum("bqt,btd->bqd", alpha, x,
                     preferred_element_type=jnp.float32)        # (bt, 1, D) f32
    out_ref[...] = out.reshape(bt, D).astype(out_ref.dtype)


def _pick_b_tile(Bp, Tp, D, H, x_itemsize, budget_bytes=20 << 20):
    """Pick the batch tile (multiple of 8, divides Bp) whose full per-step
    working set (double-buffered x block + f32 temporaries + output block)
    fits `budget_bytes`.  Prefers a single grid step (no per-step overhead)
    or an even grid (clean split across v7x's two TensorCores).  Returns
    (b_tile, vmem_limit_bytes)."""
    Hp = max(H, 128)                              # lane padding of logits/fx vregs
    per_row = (2 * Tp * D * x_itemsize            # x block, double-buffered
               + 2 * Tp * Hp * 4                  # logits + fx (f32)
               + Tp * x_itemsize                  # alpha
               + 2 * D * 4                        # einsum result + reshape (f32)
               + 2 * D * 4)                       # out block (f32), double-buffered
    fixed = 2 * D * Hp * x_itemsize + 4 * Hp * 4 + (64 << 10)   # weights/bias/v + slack
    cap = max(1, (budget_bytes - fixed) // per_row)

    cands = [d for d in range(8, Bp + 1, 8) if Bp % d == 0 and d <= cap]
    if cands:
        def rank(d):
            g = Bp // d
            return (g == 1 or g % 2 == 0, d)      # single step or even grid, then size
        b_tile = max(cands, key=rank)
    else:
        b_tile = 8                                # smallest block-legal tile; raise limit

    need = b_tile * per_row + fixed
    vmem_limit = int(min(max(need + (8 << 20), 24 << 20), 48 << 20))
    return b_tile, vmem_limit


def self_attention_pooling(x, w, b, v, *, x_dtype=jnp.bfloat16):
    """Pallas-backed SelfAttentionPooling forward.

    x: [B, T, D] (extra size-1 dims are squeezed when ndim > 3).
    w: [H, D] (attention_linear.weight), b: [H] (bias),
    v: [H] (attention_vector flattened from [H, 1]).
    x_dtype: DMA/compute dtype for x and W (bf16 fast path by default; the
             kernel is HBM-bound so halving x bytes is a near-2x win; pass
             jnp.float32 for tight accuracy).  Accumulation is always f32.
    Returns: [B, D] float32.
    """
    if x.ndim > 3:
        x = jnp.squeeze(x)
    assert x.ndim == 3, "expected [batch, length, feat_dim] after squeeze"
    B, T, D = x.shape
    H = w.shape[0]

    x_dt = jnp.dtype(x_dtype)
    sub = max(8, 32 // x_dt.itemsize)             # sublane packing: 8 f32, 16 bf16
    Tp = -(-T // sub) * sub                       # pad T -> layout-free reshape
    Bp = max(-(-B // 8) * 8, 8)                   # pad B -> legal (8,128) out blocks

    x_in = x.astype(x_dt)
    if Tp != T or Bp != B:
        # Zero rows contribute alpha_t * 0 = 0 to the weighted sum; padded
        # batch rows are sliced off below.
        x_in = jnp.pad(x_in, ((0, Bp - B), (0, Tp - T), (0, 0)))

    wt = jnp.transpose(w).astype(x_dt)            # (D, H), transposed once here
    b2 = b.reshape(1, H).astype(jnp.float32)
    v2 = v.reshape(1, H).astype(jnp.float32)

    b_tile, vmem_limit = _pick_b_tile(Bp, Tp, D, H, x_dt.itemsize)
    grid = (Bp // b_tile,)

    out = pl.pallas_call(
        _sap_kernel,
        out_shape=jax.ShapeDtypeStruct((Bp, D), jnp.float32),
        grid_spec=pltpu.PrefetchScalarGridSpec(
            num_scalar_prefetch=0,
            grid=grid,
            in_specs=[
                pl.BlockSpec((b_tile, Tp, D), lambda i: (i, 0, 0)),   # x batch tile
                pl.BlockSpec((D, H), lambda i: (0, 0)),               # W^T (replicated)
                pl.BlockSpec((1, H), lambda i: (0, 0)),               # bias
                pl.BlockSpec((1, H), lambda i: (0, 0)),               # attention vector
            ],
            out_specs=pl.BlockSpec((b_tile, D), lambda i: (i, 0)),    # lane-dense slab
        ),
        compiler_params=pltpu.CompilerParams(
            dimension_semantics=("parallel",),
            vmem_limit_bytes=vmem_limit),
    )(x_in, wt, b2, v2)
    return out[:B]


def _reference(x, w, b, v):
    """Pure-JAX f32 reference matching the PyTorch forward exactly."""
    if x.ndim > 3:
        x = jnp.squeeze(x)
    fx = jax.nn.sigmoid(jnp.einsum("btd,hd->bth", x, w) + b)    # [B, T, H]
    vf = fx @ v.reshape(-1, 1)                                   # [B, T, 1]
    alpha = jnp.tanh(vf)                                         # [B, T, 1]
    return jnp.sum(x * alpha, axis=-2)                           # [B, D]


if __name__ == "__main__":
    B, T, D, H = 16, 16, 128, 32   # batch, length, input_dim, hidden_dim

    key = jax.random.PRNGKey(0)
    kx, kw, kb, kv = jax.random.split(key, 4)

    x = jax.random.normal(kx, (B, T, D), dtype=jnp.float32)
    # nn.Linear(input_dim, hidden_dim): weight [H, D], bias [H], U(-1/sqrt(D), 1/sqrt(D))
    lim = 1.0 / jnp.sqrt(jnp.float32(D))
    w = jax.random.uniform(kw, (H, D), minval=-lim, maxval=lim, dtype=jnp.float32)
    b = jax.random.uniform(kb, (H,), minval=-lim, maxval=lim, dtype=jnp.float32)
    # attention_vector = torch.rand(H, 1): uniform [0, 1)
    v = jax.random.uniform(kv, (H,), minval=0.0, maxval=1.0, dtype=jnp.float32)

    ref = jax.block_until_ready(_reference(x, w, b, v))

    # Default fast path: bf16 DMA/compute, f32 accumulation.
    out_bf16 = jax.block_until_ready(self_attention_pooling(x, w, b, v))
    assert out_bf16.shape == (B, D)
    assert jnp.allclose(out_bf16, ref, atol=1e-1, rtol=5e-2), "bf16 path mismatch"

    # f32 path: tight tolerance.
    out_f32 = jax.block_until_ready(
        self_attention_pooling(x, w, b, v, x_dtype=jnp.float32))
    assert jnp.allclose(out_f32, ref, atol=1e-3, rtol=1e-3), "f32 path mismatch"

    # Unaligned T and non-multiple-of-8 B exercise the zero-padding path.
    B2, T2 = 6, 10
    x2 = jax.random.normal(kx, (B2, T2, D), dtype=jnp.float32)
    ref2 = jax.block_until_ready(_reference(x2, w, b, v))
    out2 = jax.block_until_ready(
        self_attention_pooling(x2, w, b, v, x_dtype=jnp.float32))
    assert out2.shape == (B2, D)
    assert jnp.allclose(out2, ref2, atol=1e-3, rtol=1e-3), "padded path mismatch"

    print("KERNEL_OK")
</pallas_src>

<mosaic_0001>
module attributes {stable_mosaic.version = 11 : i64} {
  func.func @_sap_kernel(%arg0: i32, %arg1: memref<16x16x128xbf16, #tpu.memory_space<vmem>>, %arg2: memref<128x32xbf16, #tpu.memory_space<vmem>>, %arg3: memref<1x32xf32, #tpu.memory_space<vmem>>, %arg4: memref<1x32xf32, #tpu.memory_space<vmem>>, %arg5: memref<16x128xf32, #tpu.memory_space<vmem>>) attributes {dimension_semantics = [#tpu.dimension_semantics<parallel>], iteration_bounds = array<i64: 1>, scalar_prefetch = 0 : i64, scratch_operands = 0 : i64, tpu.core_type = #tpu.core_type<tc>, window_params = [{transform_indices = @transform_0, window_bounds = array<i64: 16, 16, 128>}, {pipeline_mode = #tpu.pipeline_mode<synchronous>, transform_indices = @transform_1, window_bounds = array<i64: 128, 32>}, {pipeline_mode = #tpu.pipeline_mode<synchronous>, transform_indices = @transform_2, window_bounds = array<i64: 1, 32>}, {pipeline_mode = #tpu.pipeline_mode<synchronous>, transform_indices = @transform_3, window_bounds = array<i64: 1, 32>}, {transform_indices = @transform_4, window_bounds = array<i64: 16, 128>}]} {
    %c0 = arith.constant 0 : index
    %c0_0 = arith.constant 0 : index
    %c0_1 = arith.constant 0 : index
    %0 = vector.load %arg1[%c0, %c0_0, %c0_1] : memref<16x16x128xbf16, #tpu.memory_space<vmem>>, vector<16x16x128xbf16>
    %1 = vector.shape_cast %0 : vector<16x16x128xbf16> to vector<256x128xbf16>
    %c0_2 = arith.constant 0 : index
    %c0_3 = arith.constant 0 : index
    %2 = vector.load %arg2[%c0_2, %c0_3] : memref<128x32xbf16, #tpu.memory_space<vmem>>, vector<128x32xbf16>
    %cst = arith.constant dense<0.000000e+00> : vector<256x32xf32>
    %3 = tpu.matmul %1, %2, %cst {dimension_numbers = #tpu.dot_dimension_numbers<[1], [0], [0], [1], [0, 0, 1, 1], [], []>} : vector<256x128xbf16>, vector<128x32xbf16>, vector<256x32xf32> -> vector<256x32xf32>
    %c0_4 = arith.constant 0 : index
    %c0_5 = arith.constant 0 : index
    %4 = vector.load %arg3[%c0_4, %c0_5] : memref<1x32xf32, #tpu.memory_space<vmem>>, vector<1x32xf32>
    %5 = vector.broadcast %4 : vector<1x32xf32> to vector<256x32xf32>
    %6 = arith.addf %3, %5 : vector<256x32xf32>
    %7 = arith.negf %6 : vector<256x32xf32>
    %8 = math.exp %7 : vector<256x32xf32>
    %cst_6 = arith.constant 1.000000e+00 : f32
    %9 = vector.broadcast %cst_6 : f32 to vector<256x32xf32>
    %10 = arith.addf %9, %8 : vector<256x32xf32>
    %11 = arith.divf %9, %10 : vector<256x32xf32>
    %c0_7 = arith.constant 0 : index
    %c0_8 = arith.constant 0 : index
    %12 = vector.load %arg4[%c0_7, %c0_8] : memref<1x32xf32, #tpu.memory_space<vmem>>, vector<1x32xf32>
    %13 = vector.broadcast %12 : vector<1x32xf32> to vector<256x32xf32>
    %14 = arith.mulf %11, %13 : vector<256x32xf32>
    %cst_9 = arith.constant dense<0.000000e+00> : vector<256xf32>
    %15 = vector.multi_reduction <add>, %14, %cst_9 [1] : vector<256x32xf32> to vector<256xf32>
    %16 = vector.shape_cast %15 : vector<256xf32> to vector<256x1xf32>
    %17 = math.tanh %16 : vector<256x1xf32>
    %18 = vector.shape_cast %17 : vector<256x1xf32> to vector<16x1x16xf32>
    %19 = arith.truncf %18 : vector<16x1x16xf32> to vector<16x1x16xbf16>
    "tpu.trace_start"() <{level = 10 : i32, message = "bqt,btd->bqd"}> : () -> ()
    %cst_10 = arith.constant dense<0.000000e+00> : vector<16x1x128xf32>
    %20 = tpu.matmul %19, %0, %cst_10 {dimension_numbers = #tpu.dot_dimension_numbers<[2], [1], [1], [2], [0, 0, 0, 1, 1, 2], [0], [0]>} : vector<16x1x16xbf16>, vector<16x16x128xbf16>, vector<16x1x128xf32> -> vector<16x1x128xf32>
    "tpu.trace_stop"() : () -> ()
    %21 = vector.shape_cast %20 : vector<16x1x128xf32> to vector<16x128xf32>
    %c0_11 = arith.constant 0 : index
    %c0_12 = arith.constant 0 : index
    %22 = vector.load %arg5[%c0_11, %c0_12] : memref<16x128xf32, #tpu.memory_space<vmem>>, vector<16x128xf32>
    tpu.vector_store %arg5[%c0_11, %c0_12], %21 {strides = array<i32>} : memref<16x128xf32, #tpu.memory_space<vmem>>, vector<16x128xf32>,
    return
  }
  func.func @transform_0(%arg0: i32) -> (i32, i32, i32) {
    %c0_i32 = arith.constant 0 : i32
    %c0_i32_0 = arith.constant 0 : i32
    %c0_i32_1 = arith.constant 0 : i32
    return %arg0, %c0_i32, %c0_i32_0 : i32, i32, i32
  }
  func.func @transform_1(%arg0: i32) -> (i32, i32) {
    %c0_i32 = arith.constant 0 : i32
    %c0_i32_0 = arith.constant 0 : i32
    %c0_i32_1 = arith.constant 0 : i32
    return %c0_i32, %c0_i32_0 : i32, i32
  }
  func.func @transform_2(%arg0: i32) -> (i32, i32) {
    %c0_i32 = arith.constant 0 : i32
    %c0_i32_0 = arith.constant 0 : i32
    %c0_i32_1 = arith.constant 0 : i32
    return %c0_i32, %c0_i32_0 : i32, i32
  }
  func.func @transform_3(%arg0: i32) -> (i32, i32) {
    %c0_i32 = arith.constant 0 : i32
    %c0_i32_0 = arith.constant 0 : i32
    %c0_i32_1 = arith.constant 0 : i32
    return %c0_i32, %c0_i32_0 : i32, i32
  }
  func.func @transform_4(%arg0: i32) -> (i32, i32) {
    %c0_i32 = arith.constant 0 : i32
    %c0_i32_0 = arith.constant 0 : i32
    return %arg0, %c0_i32 : i32, i32
  }
}

</mosaic_0001>

<llo_original>
// kernel: tpu_custom_call.1
$region0: #{tpu_custom_call.1}
  #allocation0 [shape = 'u32[]', space=smem, size = 0x4, offset = 0x4, fixed_abs, tag = 'smem constant byte address 0x4 - core index']
  #allocation1 [shape = 'u32[72,128]{1,0:T(1,128)}', space=vmem, size = 0x9000, scoped, tag = 'internal scratch']
  %s0 = inlined_call_operand.hbm [shape: bf16[16,16,128], index: 0, kind: input, shape index: {}]
  %s1 = inlined_call_operand.vmem [shape: bf16[128,32], index: 1, kind: input, shape index: {}]
  %s2 = inlined_call_operand.vmem [shape: f32[1,32], index: 2, kind: input, shape index: {}]
  %s3 = inlined_call_operand.vmem [shape: f32[1,32], index: 3, kind: input, shape index: {}]
  %s4 = inlined_call_operand.hbm [shape: f32[16,128], index: 4, kind: output, shape index: {}]
  %s5 = sld [smem:[#allocation0]]
  $region30: #{tpu_custom_call.1} parent=0
    _
  %s7 = ssub.s32 1, %s5
  %s8 = scalar_select 0, %s7, %s5
  $region1: #{tpu_custom_call.1} parent=0
    #allocation2 [shape = 'u8[65536]{0}', space=vmem, size = 0x10000, scoped, tag = 'input window, operand 0, single buffered']
    #allocation3 [shape = 's32[1]{0}', space=sflag, size = 0x4, scoped, tag = 'scoped memory for tpu_custom_call.1']
    #allocation4 [shape = 's32[1]{0}', space=sflag, size = 0x4, scoped, tag = 'scoped memory for tpu_custom_call.1']
    #allocation5 [shape = 'u8[8192]{0}', space=vmem, size = 0x2000, scoped, tag = 'output window, operand 0, single buffered']
    %9 = vsyncpa [#allocation3], 0
    %10 = vsyncpa [#allocation4], 0
    // Predicated region
    $region2: #{tpu_custom_call.1} parent=1 // pred_check
      _
    $region3: #{tpu_custom_call.1} parent=1 // pred_check_branch
      %12 = sbr.rel (0) target = $region5
    $region4: #{tpu_custom_call.1} parent=1 // pred_region
      %14 = vsyncadd [#allocation3], 0
      %s15 = sshll.u32 %s0, 4
      %s16 = int_to_ptr.hbm [resolvable:$true] %s15
      %s17 = sshll.u32 [#allocation2], 4
      %s18 = int_to_ptr.vmem [resolvable:$true] %s17
      %23 = dma.hbm_to_vmem [thread:$0]  %s16, 2048, %s18, [#allocation3], 64, 64, 4
    $region5: #{tpu_custom_call.1} parent=1 // pred_fallthru
      _
    // Predicated region
    $region6: #{tpu_custom_call.1} parent=1 // pred_check
      _
    $region7: #{tpu_custom_call.1} parent=1 // pred_check_branch
      %25 = sbr.rel (0) target = $region9
    $region8: #{tpu_custom_call.1} parent=1 // pred_region
      _
    $region9: #{tpu_custom_call.1} parent=1 // pred_fallthru
      _
    // Predicated region
    $region10: #{tpu_custom_call.1} parent=1 // pred_check
      _
    $region11: #{tpu_custom_call.1} parent=1 // pred_check_branch
      %27 = sbr.rel (0) target = $region13
    $region12: #{tpu_custom_call.1} parent=1 // pred_region
      _
    $region13: #{tpu_custom_call.1} parent=1 // pred_fallthru
      _
    // Predicated region
    $region14: #{tpu_custom_call.1} parent=1 // pred_check
      _
    $region15: #{tpu_custom_call.1} parent=1 // pred_check_branch
      %29 = sbr.rel (0) target = $region17
    $region16: #{tpu_custom_call.1} parent=1 // pred_region
      _
    $region17: #{tpu_custom_call.1} parent=1 // pred_fallthru
      _
    // Predicated region
    $region18: #{tpu_custom_call.1} parent=1 // pred_check
      _
    $region19: #{tpu_custom_call.1} parent=1 // pred_check_branch
      %31 = sbr.rel (0) target = $region21
    $region20: #{tpu_custom_call.1} parent=1 // pred_region
      %33 = dma.done [#allocation3], 2048
    $region21: #{tpu_custom_call.1} parent=1 // pred_fallthru
      _
    %v35 = vld [vmem:[#allocation2] sm:$0xf]
    %v36 = vld [vmem:[#allocation2 + $0x4] sm:$0xf]
    %v37 = vld [vmem:[#allocation2 + $0x8] sm:$0xf]
    %v38 = vld [vmem:[#allocation2 + $0xc] sm:$0xf]
    %v39 = vld [vmem:[#allocation2 + $0x10] sm:$0xf]
    %v40 = vld [vmem:[#allocation2 + $0x14] sm:$0xf]
    %v41 = vld [vmem:[#allocation2 + $0x18] sm:$0xf]
    %v42 = vld [vmem:[#allocation2 + $0x1c] sm:$0xf]
    %v43 = vld [vmem:[#allocation2 + $0x20] sm:$0xf]
    %v44 = vld [vmem:[#allocation2 + $0x24] sm:$0xf]
    %v45 = vld [vmem:[#allocation2 + $0x28] sm:$0xf]
    %v46 = vld [vmem:[#allocation2 + $0x2c] sm:$0xf]
    %v47 = vld [vmem:[#allocation2 + $0x30] sm:$0xf]
    %v48 = vld [vmem:[#allocation2 + $0x34] sm:$0xf]
    %v49 = vld [vmem:[#allocation2 + $0x38] sm:$0xf]
    %v50 = vld [vmem:[#allocation2 + $0x3c] sm:$0xf]
    %v51 = vld [vmem:[#allocation2 + $0x40] sm:$0xf]
    %v52 = vld [vmem:[#allocation2 + $0x44] sm:$0xf]
    %v53 = vld [vmem:[#allocation2 + $0x48] sm:$0xf]
    %v54 = vld [vmem:[#allocation2 + $0x4c] sm:$0xf]
    %v55 = vld [vmem:[#allocation2 + $0x50] sm:$0xf]
    %v56 = vld [vmem:[#allocation2 + $0x54] sm:$0xf]
    %v57 = vld [vmem:[#allocation2 + $0x58] sm:$0xf]
    %v58 = vld [vmem:[#allocation2 + $0x5c] sm:$0xf]
    %v59 = vld [vmem:[#allocation2 + $0x60] sm:$0xf]
    %v60 = vld [vmem:[#allocation2 + $0x64] sm:$0xf]
    %v61 = vld [vmem:[#allocation2 + $0x68] sm:$0xf]
    %v62 = vld [vmem:[#allocation2 + $0x6c] sm:$0xf]
    %v63 = vld [vmem:[#allocation2 + $0x70] sm:$0xf]
    %v64 = vld [vmem:[#allocation2 + $0x74] sm:$0xf]
    %v65 = vld [vmem:[#allocation2 + $0x78] sm:$0xf]
    %v66 = vld [vmem:[#allocation2 + $0x7c] sm:$0xf]
    %v67 = vld [vmem:[%s1] sm:$0xf]
    %v68 = vld [vmem:[%s1 + $0x4] sm:$0xf]
    %v69 = vld [vmem:[%s1 + $0x8] sm:$0xf]
    %v70 = vld [vmem:[%s1 + $0xc] sm:$0xf]
    %v71 = vld [vmem:[%s1 + $0x10] sm:$0xf]
    %v72 = vld [vmem:[%s1 + $0x14] sm:$0xf]
    %v73 = vld [vmem:[%s1 + $0x18] sm:$0xf]
    %v74 = vld [vmem:[%s1 + $0x1c] sm:$0xf]
    %v75 = vld [vmem:[%s1 + $0x20] sm:$0xf]
    %v76 = vld [vmem:[%s1 + $0x24] sm:$0xf]
    %v77 = vld [vmem:[%s1 + $0x28] sm:$0xf]
    %v78 = vld [vmem:[%s1 + $0x2c] sm:$0xf]
    %v79 = vld [vmem:[%s1 + $0x30] sm:$0xf]
    %v80 = vld [vmem:[%s1 + $0x34] sm:$0xf]
    %v81 = vld [vmem:[%s1 + $0x38] sm:$0xf]
    %v82 = vld [vmem:[%s1 + $0x3c] sm:$0xf]
    %v83 = vld [vmem:[%s2] sm:$0x1]
    %v85 = vperm.slane %v83, 0
    %v119 = vunpack.c.l.b16 %v35
    %v120 = vunpack.c.l.b16 %v36
    %v121 = vunpack.c.l.b16 %v37
    %v122 = vunpack.c.l.b16 %v38
    %v123 = vunpack.c.l.b16 %v39
    %v124 = vunpack.c.l.b16 %v40
    %v125 = vunpack.c.l.b16 %v41
    %v126 = vunpack.c.l.b16 %v42
    %v127 = vunpack.c.l.b16 %v43
    %v128 = vunpack.c.l.b16 %v44
    %v129 = vunpack.c.l.b16 %v45
    %v130 = vunpack.c.l.b16 %v46
    %v131 = vunpack.c.l.b16 %v47
    %v132 = vunpack.c.l.b16 %v48
    %v133 = vunpack.c.l.b16 %v49
    %v134 = vunpack.c.l.b16 %v50
    %v135 = vunpack.c.l.b16 %v51
    %v136 = vunpack.c.l.b16 %v52
    %v137 = vunpack.c.l.b16 %v53
    %v138 = vunpack.c.l.b16 %v54
    %v139 = vunpack.c.l.b16 %v55
    %v140 = vunpack.c.l.b16 %v56
    %v141 = vunpack.c.l.b16 %v57
    %v142 = vunpack.c.l.b16 %v58
    %v143 = vunpack.c.l.b16 %v59
    %v144 = vunpack.c.l.b16 %v60
    %v145 = vunpack.c.l.b16 %v61
    %v146 = vunpack.c.l.b16 %v62
    %v147 = vunpack.c.l.b16 %v63
    %v148 = vunpack.c.l.b16 %v64
    %v149 = vunpack.c.l.b16 %v65
    %v150 = vunpack.c.l.b16 %v66
    %v151 = vpack.c.b16 %v120, %v119
    %v152 = vpack.c.b16 %v122, %v121
    %v153 = vpack.c.b16 %v124, %v123
    %v154 = vpack.c.b16 %v126, %v125
    %v155 = vpack.c.b16 %v128, %v127
    %v156 = vpack.c.b16 %v130, %v129
    %v157 = vpack.c.b16 %v132, %v131
    %v158 = vpack.c.b16 %v134, %v133
    %v159 = vpack.c.b16 %v136, %v135
    %v160 = vpack.c.b16 %v138, %v137
    %v161 = vpack.c.b16 %v140, %v139
    %v162 = vpack.c.b16 %v142, %v141
    %v163 = vpack.c.b16 %v144, %v143
    %v164 = vpack.c.b16 %v146, %v145
    %v165 = vpack.c.b16 %v148, %v147
    %v166 = vpack.c.b16 %v150, %v149
    %v199 = vunpack.c.l.b16 %v67
    %v200 = vunpack.c.l.b16 %v68
    %v201 = vunpack.c.l.b16 %v69
    %v202 = vunpack.c.l.b16 %v70
    %v203 = vunpack.c.l.b16 %v71
    %v204 = vunpack.c.l.b16 %v72
    %v205 = vunpack.c.l.b16 %v73
    %v206 = vunpack.c.l.b16 %v74
    %v207 = vunpack.c.l.b16 %v75
    %v208 = vunpack.c.l.b16 %v76
    %v209 = vunpack.c.l.b16 %v77
    %v210 = vunpack.c.l.b16 %v78
    %v211 = vunpack.c.l.b16 %v79
    %v212 = vunpack.c.l.b16 %v80
    %v213 = vunpack.c.l.b16 %v81
    %v214 = vunpack.c.l.b16 %v82
    %v215 = vpack.c.b16 %v200, %v199
    %v216 = vpack.c.b16 %v202, %v201
    %v217 = vpack.c.b16 %v204, %v203
    %v218 = vpack.c.b16 %v206, %v205
    %v219 = vpack.c.b16 %v208, %v207
    %v220 = vpack.c.b16 %v210, %v209
    %v221 = vpack.c.b16 %v212, %v211
    %v222 = vpack.c.b16 %v214, %v213
    %231 = vmatpush.bf16.msra.mxu0 %v222
    %232 = vmatpush.bf16.msra.mxu0 %v221
    %233 = vmatpush.bf16.msra.mxu0 %v220
    %234 = vmatpush.bf16.msra.mxu0 %v219
    %235 = vmatpush.bf16.msra.mxu0 %v218
    %236 = vmatpush.bf16.msra.mxu0 %v217
    %237 = vmatpush.bf16.msra.mxu0 %v216
    %238 = vmatpush.bf16.msra.mxu0 %v215
    %239 = vmatmul.bf16.gmra.mxu0 %v151
    %v240 = vpop.f32.mrf.mxu0
    %v241 = vadd.f32 %v85, %v240
    %v242 = vpop.f32.mrf.mxu0
    %v243 = vadd.f32 %v85, %v242
    %244 = vmatmul.bf16.gmra.mxu0 %v152
    %v245 = vpop.f32.mrf.mxu0
    %v246 = vadd.f32 %v85, %v245
    %v247 = vpop.f32.mrf.mxu0
    %v248 = vadd.f32 %v85, %v247
    %249 = vmatmul.bf16.gmra.mxu0 %v153
    %v250 = vpop.f32.mrf.mxu0
    %v251 = vadd.f32 %v85, %v250
    %v252 = vpop.f32.mrf.mxu0
    %v253 = vadd.f32 %v85, %v252
    %254 = vmatmul.bf16.gmra.mxu0 %v154
    %v255 = vpop.f32.mrf.mxu0
    %v256 = vadd.f32 %v85, %v255
    %v257 = vpop.f32.mrf.mxu0
    %v258 = vadd.f32 %v85, %v257
    %259 = vmatmul.bf16.gmra.mxu0 %v155
    %v260 = vpop.f32.mrf.mxu0
    %v261 = vadd.f32 %v85, %v260
    %v262 = vpop.f32.mrf.mxu0
    %v263 = vadd.f32 %v85, %v262
    %264 = vmatmul.bf16.gmra.mxu0 %v156
    %v265 = vpop.f32.mrf.mxu0
    %v266 = vadd.f32 %v85, %v265
    %v267 = vpop.f32.mrf.mxu0
    %v268 = vadd.f32 %v85, %v267
    %269 = vmatmul.bf16.gmra.mxu0 %v157
    %v270 = vpop.f32.mrf.mxu0
    %v271 = vadd.f32 %v85, %v270
    %v272 = vpop.f32.mrf.mxu0
    %v273 = vadd.f32 %v85, %v272
    %274 = vmatmul.bf16.gmra.mxu0 %v158
    %v275 = vpop.f32.mrf.mxu0
    %v276 = vadd.f32 %v85, %v275
    %v277 = vpop.f32.mrf.mxu0
    %v278 = vadd.f32 %v85, %v277
    %279 = vmatmul.bf16.gmra.mxu0 %v159
    %v280 = vpop.f32.mrf.mxu0
    %v281 = vadd.f32 %v85, %v280
    %v282 = vpop.f32.mrf.mxu0
    %v283 = vadd.f32 %v85, %v282
    %284 = vmatmul.bf16.gmra.mxu0 %v160
    %v285 = vpop.f32.mrf.mxu0
    %v286 = vadd.f32 %v85, %v285
    %v287 = vpop.f32.mrf.mxu0
    %v288 = vadd.f32 %v85, %v287
    %289 = vmatmul.bf16.gmra.mxu0 %v161
    %v290 = vpop.f32.mrf.mxu0
    %v291 = vadd.f32 %v85, %v290
    %v292 = vpop.f32.mrf.mxu0
    %v293 = vadd.f32 %v85, %v292
    %294 = vmatmul.bf16.gmra.mxu0 %v162
    %v295 = vpop.f32.mrf.mxu0
    %v296 = vadd.f32 %v85, %v295
    %v297 = vpop.f32.mrf.mxu0
    %v298 = vadd.f32 %v85, %v297
    %299 = vmatmul.bf16.gmra.mxu0 %v163
    %v300 = vpop.f32.mrf.mxu0
    %v301 = vadd.f32 %v85, %v300
    %v302 = vpop.f32.mrf.mxu0
    %v303 = vadd.f32 %v85, %v302
    %304 = vmatmul.bf16.gmra.mxu0 %v164
    %v305 = vpop.f32.mrf.mxu0
    %v306 = vadd.f32 %v85, %v305
    %v307 = vpop.f32.mrf.mxu0
    %v308 = vadd.f32 %v85, %v307
    %309 = vmatmul.bf16.gmra.mxu0 %v165
    %v310 = vpop.f32.mrf.mxu0
    %v311 = vadd.f32 %v85, %v310
    %v312 = vpop.f32.mrf.mxu0
    %v313 = vadd.f32 %v85, %v312
    %314 = vmatmul.bf16.gmra.mxu0 %v166
    %v315 = vpop.f32.mrf.mxu0
    %v316 = vadd.f32 %v85, %v315
    %v317 = vpop.f32.mrf.mxu0
    %v318 = vadd.f32 %v85, %v317
    %319 = vdwg.mxu0
    %v320 = vxor.u32 %v241, 2147483648
    %v321 = vxor.u32 %v243, 2147483648
    %v322 = vxor.u32 %v246, 2147483648
    %v323 = vxor.u32 %v248, 2147483648
    %v324 = vxor.u32 %v251, 2147483648
    %v325 = vxor.u32 %v253, 2147483648
    %v326 = vxor.u32 %v256, 2147483648
    %v327 = vxor.u32 %v258, 2147483648
    %v328 = vxor.u32 %v261, 2147483648
    %v329 = vxor.u32 %v263, 2147483648
    %v330 = vxor.u32 %v266, 2147483648
    %v331 = vxor.u32 %v268, 2147483648
    %v332 = vxor.u32 %v271, 2147483648
    %v333 = vxor.u32 %v273, 2147483648
    %v334 = vxor.u32 %v276, 2147483648
    %v335 = vxor.u32 %v278, 2147483648
    %v336 = vxor.u32 %v281, 2147483648
    %v337 = vxor.u32 %v283, 2147483648
    %v338 = vxor.u32 %v286, 2147483648
    %v339 = vxor.u32 %v288, 2147483648
    %v340 = vxor.u32 %v291, 2147483648
    %v341 = vxor.u32 %v293, 2147483648
    %v342 = vxor.u32 %v296, 2147483648
    %v343 = vxor.u32 %v298, 2147483648
    %v344 = vxor.u32 %v301, 2147483648
    %v345 = vxor.u32 %v303, 2147483648
    %v346 = vxor.u32 %v306, 2147483648
    %v347 = vxor.u32 %v308, 2147483648
    %v348 = vxor.u32 %v311, 2147483648
    %v349 = vxor.u32 %v313, 2147483648
    %v350 = vxor.u32 %v316, 2147483648
    %v351 = vxor.u32 %v318, 2147483648
    %v352 = vmul.f32 %v320, 1.442695
    %v353 = vpow.pop %v352
    %v354 = vmul.f32 %v321, 1.442695
    %v355 = vpow.pop %v354
    %v356 = vmul.f32 %v322, 1.442695
    %v357 = vpow.pop %v356
    %v358 = vmul.f32 %v323, 1.442695
    %v359 = vpow.pop %v358
    %v360 = vmul.f32 %v324, 1.442695
    %v361 = vpow.pop %v360
    %v362 = vmul.f32 %v325, 1.442695
    %v363 = vpow.pop %v362
    %v364 = vmul.f32 %v326, 1.442695
    %v365 = vpow.pop %v364
    %v366 = vmul.f32 %v327, 1.442695
    %v367 = vpow.pop %v366
    %v368 = vmul.f32 %v328, 1.442695
    %v369 = vpow.pop %v368
    %v370 = vmul.f32 %v329, 1.442695
    %v371 = vpow.pop %v370
    %v372 = vmul.f32 %v330, 1.442695
    %v373 = vpow.pop %v372
    %v374 = vmul.f32 %v331, 1.442695
    %v375 = vpow.pop %v374
    %v376 = vmul.f32 %v332, 1.442695
    %v377 = vpow.pop %v376
    %v378 = vmul.f32 %v333, 1.442695
    %v379 = vpow.pop %v378
    %v380 = vmul.f32 %v334, 1.442695
    %v381 = vpow.pop %v380
    %v382 = vmul.f32 %v335, 1.442695
    %v383 = vpow.pop %v382
    %v384 = vmul.f32 %v336, 1.442695
    %v385 = vpow.pop %v384
    %v386 = vmul.f32 %v337, 1.442695
    %v387 = vpow.pop %v386
    %v388 = vmul.f32 %v338, 1.442695
    %v389 = vpow.pop %v388
    %v390 = vmul.f32 %v339, 1.442695
    %v391 = vpow.pop %v390
    %v392 = vmul.f32 %v340, 1.442695
    %v393 = vpow.pop %v392
    %v394 = vmul.f32 %v341, 1.442695
    %v395 = vpow.pop %v394
    %v396 = vmul.f32 %v342, 1.442695
    %v397 = vpow.pop %v396
    %v398 = vmul.f32 %v343, 1.442695
    %v399 = vpow.pop %v398
    %v400 = vmul.f32 %v344, 1.442695
    %v401 = vpow.pop %v400
    %v402 = vmul.f32 %v345, 1.442695
    %v403 = vpow.pop %v402
    %v404 = vmul.f32 %v346, 1.442695
    %v405 = vpow.pop %v404
    %v406 = vmul.f32 %v347, 1.442695
    %v407 = vpow.pop %v406
    %v408 = vmul.f32 %v348, 1.442695
    %v409 = vpow.pop %v408
    %v410 = vmul.f32 %v349, 1.442695
    %v411 = vpow.pop %v410
    %v412 = vmul.f32 %v350, 1.442695
    %v413 = vpow.pop %v412
    %v414 = vmul.f32 %v351, 1.442695
    %v415 = vpow.pop %v414
    %v416 = vadd.f32 %v353, 1.0
    %v417 = vadd.f32 %v355, 1.0
    %v418 = vadd.f32 %v357, 1.0
    %v419 = vadd.f32 %v359, 1.0
    %v420 = vadd.f32 %v361, 1.0
    %v421 = vadd.f32 %v363, 1.0
    %v422 = vadd.f32 %v365, 1.0
    %v423 = vadd.f32 %v367, 1.0
    %v424 = vadd.f32 %v369, 1.0
    %v425 = vadd.f32 %v371, 1.0
    %v426 = vadd.f32 %v373, 1.0
    %v427 = vadd.f32 %v375, 1.0
    %v428 = vadd.f32 %v377, 1.0
    %v429 = vadd.f32 %v379, 1.0
    %v430 = vadd.f32 %v381, 1.0
    %v431 = vadd.f32 %v383, 1.0
    %v432 = vadd.f32 %v385, 1.0
    %v433 = vadd.f32 %v387, 1.0
    %v434 = vadd.f32 %v389, 1.0
    %v435 = vadd.f32 %v391, 1.0
    %v436 = vadd.f32 %v393, 1.0
    %v437 = vadd.f32 %v395, 1.0
    %v438 = vadd.f32 %v397, 1.0
    %v439 = vadd.f32 %v399, 1.0
    %v440 = vadd.f32 %v401, 1.0
    %v441 = vadd.f32 %v403, 1.0
    %v442 = vadd.f32 %v405, 1.0
    %v443 = vadd.f32 %v407, 1.0
    %v444 = vadd.f32 %v409, 1.0
    %v445 = vadd.f32 %v411, 1.0
    %v446 = vadd.f32 %v413, 1.0
    %v447 = vadd.f32 %v415, 1.0
    %v448 = vrcp.pop %v416
    %v449 = vmul.f32 %v416, %v448
    %v450 = vsub.f32 1.0, %v449
    %v451 = vmul.f32 %v448, %v450
    %v452 = vadd.f32 %v448, %v451
    %vm453 = vweird.f32 %v416
    %vm454 = vweird.f32 %v448
    %vm455 = vmor %vm453, %vm454
    %v456 = vsel %vm455, %v448, %v452
    %v457 = vand.u32 2147483647, %v416
    %vm458 = vcmp.eq.f32.partialorder %v457, 8.507059e+37
    %v459 = vand.u32 %v416, 2147483648
    %v460 = vor.u32 1.1754944e-38, %v459
    %v461 = vsel %vm458, %v460, %v456
    %v462 = vmul.f32 1.0, %v461
    %v463 = vrcp.pop %v417
    %v464 = vmul.f32 %v417, %v463
    %v465 = vsub.f32 1.0, %v464
    %v466 = vmul.f32 %v463, %v465
    %v467 = vadd.f32 %v463, %v466
    %vm468 = vweird.f32 %v417
    %vm469 = vweird.f32 %v463
    %vm470 = vmor %vm468, %vm469
    %v471 = vsel %vm470, %v463, %v467
    %v472 = vand.u32 2147483647, %v417
    %vm473 = vcmp.eq.f32.partialorder %v472, 8.507059e+37
    %v474 = vand.u32 %v417, 2147483648
    %v475 = vor.u32 1.1754944e-38, %v474
    %v476 = vsel %vm473, %v475, %v471
    %v477 = vmul.f32 1.0, %v476
    %v478 = vrcp.pop %v418
    %v479 = vmul.f32 %v418, %v478
    %v480 = vsub.f32 1.0, %v479
    %v481 = vmul.f32 %v478, %v480
    %v482 = vadd.f32 %v478, %v481
    %vm483 = vweird.f32 %v418
    %vm484 = vweird.f32 %v478
    %vm485 = vmor %vm483, %vm484
    %v486 = vsel %vm485, %v478, %v482
    %v487 = vand.u32 2147483647, %v418
    %vm488 = vcmp.eq.f32.partialorder %v487, 8.507059e+37
    %v489 = vand.u32 %v418, 2147483648
    %v490 = vor.u32 1.1754944e-38, %v489
    %v491 = vsel %vm488, %v490, %v486
    %v492 = vmul.f32 1.0, %v491
    %v493 = vrcp.pop %v419
    %v494 = vmul.f32 %v419, %v493
    %v495 = vsub.f32 1.0, %v494
    %v496 = vmul.f32 %v493, %v495
    %v497 = vadd.f32 %v493, %v496
    %vm498 = vweird.f32 %v419
    %vm499 = vweird.f32 %v493
    %vm500 = vmor %vm498, %vm499
    %v501 = vsel %vm500, %v493, %v497
    %v502 = vand.u32 2147483647, %v419
    %vm503 = vcmp.eq.f32.partialorder %v502, 8.507059e+37
    %v504 = vand.u32 %v419, 2147483648
    %v505 = vor.u32 1.1754944e-38, %v504
    %v506 = vsel %vm503, %v505, %v501
    %v507 = vmul.f32 1.0, %v506
    %v508 = vrcp.pop %v420
    %v509 = vmul.f32 %v420, %v508
    %v510 = vsub.f32 1.0, %v509
    %v511 = vmul.f32 %v508, %v510
    %v512 = vadd.f32 %v508, %v511
    %vm513 = vweird.f32 %v420
    %vm514 = vweird.f32 %v508
    %vm515 = vmor %vm513, %vm514
    %v516 = vsel %vm515, %v508, %v512
    %v517 = vand.u32 2147483647, %v420
    %vm518 = vcmp.eq.f32.partialorder %v517, 8.507059e+37
    %v519 = vand.u32 %v420, 2147483648
    %v520 = vor.u32 1.1754944e-38, %v519
    %v521 = vsel %vm518, %v520, %v516
    %v522 = vmul.f32 1.0, %v521
    %v523 = vrcp.pop %v421
    %v524 = vmul.f32 %v421, %v523
    %v525 = vsub.f32 1.0, %v524
    %v526 = vmul.f32 %v523, %v525
    %v527 = vadd.f32 %v523, %v526
    %vm528 = vweird.f32 %v421
    %vm529 = vweird.f32 %v523
    %vm530 = vmor %vm528, %vm529
    %v531 = vsel %vm530, %v523, %v527
    %v532 = vand.u32 2147483647, %v421
    %vm533 = vcmp.eq.f32.partialorder %v532, 8.507059e+37
    %v534 = vand.u32 %v421, 2147483648
    %v535 = vor.u32 1.1754944e-38, %v534
    %v536 = vsel %vm533, %v535, %v531
    %v537 = vmul.f32 1.0, %v536
    %v538 = vrcp.pop %v422
    %v539 = vmul.f32 %v422, %v538
    %v540 = vsub.f32 1.0, %v539
    %v541 = vmul.f32 %v538, %v540
    %v542 = vadd.f32 %v538, %v541
    %vm543 = vweird.f32 %v422
    %vm544 = vweird.f32 %v538
    %vm545 = vmor %vm543, %vm544
    %v546 = vsel %vm545, %v538, %v542
    %v547 = vand.u32 2147483647, %v422
    %vm548 = vcmp.eq.f32.partialorder %v547, 8.507059e+37
    %v549 = vand.u32 %v422, 2147483648
    %v550 = vor.u32 1.1754944e-38, %v549
    %v551 = vsel %vm548, %v550, %v546
    %v552 = vmul.f32 1.0, %v551
    %v553 = vrcp.pop %v423
    %v554 = vmul.f32 %v423, %v553
    %v555 = vsub.f32 1.0, %v554
    %v556 = vmul.f32 %v553, %v555
    %v557 = vadd.f32 %v553, %v556
    %vm558 = vweird.f32 %v423
    %vm559 = vweird.f32 %v553
    %vm560 = vmor %vm558, %vm559
    %v561 = vsel %vm560, %v553, %v557
    %v562 = vand.u32 2147483647, %v423
    %vm563 = vcmp.eq.f32.partialorder %v562, 8.507059e+37
    %v564 = vand.u32 %v423, 2147483648
    %v565 = vor.u32 1.1754944e-38, %v564
    %v566 = vsel %vm563, %v565, %v561
    %v567 = vmul.f32 1.0, %v566
    %v568 = vrcp.pop %v424
    %v569 = vmul.f32 %v424, %v568
    %v570 = vsub.f32 1.0, %v569
    %v571 = vmul.f32 %v568, %v570
    %v572 = vadd.f32 %v568, %v571
    %vm573 = vweird.f32 %v424
    %vm574 = vweird.f32 %v568
    %vm575 = vmor %vm573, %vm574
    %v576 = vsel %vm575, %v568, %v572
    %v577 = vand.u32 2147483647, %v424
    %vm578 = vcmp.eq.f32.partialorder %v577, 8.507059e+37
    %v579 = vand.u32 %v424, 2147483648
    %v580 = vor.u32 1.1754944e-38, %v579
    %v581 = vsel %vm578, %v580, %v576
    %v582 = vmul.f32 1.0, %v581
    %v583 = vrcp.pop %v425
    %v584 = vmul.f32 %v425, %v583
    %v585 = vsub.f32 1.0, %v584
    %v586 = vmul.f32 %v583, %v585
    %v587 = vadd.f32 %v583, %v586
    %vm588 = vweird.f32 %v425
    %vm589 = vweird.f32 %v583
    %vm590 = vmor %vm588, %vm589
    %v591 = vsel %vm590, %v583, %v587
    %v592 = vand.u32 2147483647, %v425
    %vm593 = vcmp.eq.f32.partialorder %v592, 8.507059e+37
    %v594 = vand.u32 %v425, 2147483648
    %v595 = vor.u32 1.1754944e-38, %v594
    %v596 = vsel %vm593, %v595, %v591
    %v597 = vmul.f32 1.0, %v596
    %v598 = vrcp.pop %v426
    %v599 = vmul.f32 %v426, %v598
    %v600 = vsub.f32 1.0, %v599
    %v601 = vmul.f32 %v598, %v600
    %v602 = vadd.f32 %v598, %v601
    %vm603 = vweird.f32 %v426
    %vm604 = vweird.f32 %v598
    %vm605 = vmor %vm603, %vm604
    %v606 = vsel %vm605, %v598, %v602
    %v607 = vand.u32 2147483647, %v426
    %vm608 = vcmp.eq.f32.partialorder %v607, 8.507059e+37
    %v609 = vand.u32 %v426, 2147483648
    %v610 = vor.u32 1.1754944e-38, %v609
    %v611 = vsel %vm608, %v610, %v606
    %v612 = vmul.f32 1.0, %v611
    %v613 = vrcp.pop %v427
    %v614 = vmul.f32 %v427, %v613
    %v615 = vsub.f32 1.0, %v614
    %v616 = vmul.f32 %v613, %v615
    %v617 = vadd.f32 %v613, %v616
    %vm618 = vweird.f32 %v427
    %vm619 = vweird.f32 %v613
    %vm620 = vmor %vm618, %vm619
    %v621 = vsel %vm620, %v613, %v617
    %v622 = vand.u32 2147483647, %v427
    %vm623 = vcmp.eq.f32.partialorder %v622, 8.507059e+37
    %v624 = vand.u32 %v427, 2147483648
    %v625 = vor.u32 1.1754944e-38, %v624
    %v626 = vsel %vm623, %v625, %v621
    %v627 = vmul.f32 1.0, %v626
    %v628 = vrcp.pop %v428
    %v629 = vmul.f32 %v428, %v628
    %v630 = vsub.f32 1.0, %v629
    %v631 = vmul.f32 %v628, %v630
    %v632 = vadd.f32 %v628, %v631
    %vm633 = vweird.f32 %v428
    %vm634 = vweird.f32 %v628
    %vm635 = vmor %vm633, %vm634
    %v636 = vsel %vm635, %v628, %v632
    %v637 = vand.u32 2147483647, %v428
    %vm638 = vcmp.eq.f32.partialorder %v637, 8.507059e+37
    %v639 = vand.u32 %v428, 2147483648
    %v640 = vor.u32 1.1754944e-38, %v639
    %v641 = vsel %vm638, %v640, %v636
    %v642 = vmul.f32 1.0, %v641
    %v643 = vrcp.pop %v429
    %v644 = vmul.f32 %v429, %v643
    %v645 = vsub.f32 1.0, %v644
    %v646 = vmul.f32 %v643, %v645
    %v647 = vadd.f32 %v643, %v646
    %vm648 = vweird.f32 %v429
    %vm649 = vweird.f32 %v643
    %vm650 = vmor %vm648, %vm649
    %v651 = vsel %vm650, %v643, %v647
    %v652 = vand.u32 2147483647, %v429
    %vm653 = vcmp.eq.f32.partialorder %v652, 8.507059e+37
    %v654 = vand.u32 %v429, 2147483648
    %v655 = vor.u32 1.1754944e-38, %v654
    %v656 = vsel %vm653, %v655, %v651
    %v657 = vmul.f32 1.0, %v656
    %v658 = vrcp.pop %v430
    %v659 = vmul.f32 %v430, %v658
    %v660 = vsub.f32 1.0, %v659
    %v661 = vmul.f32 %v658, %v660
    %v662 = vadd.f32 %v658, %v661
    %vm663 = vweird.f32 %v430
    %vm664 = vweird.f32 %v658
    %vm665 = vmor %vm663, %vm664
    %v666 = vsel %vm665, %v658, %v662
    %v667 = vand.u32 2147483647, %v430
    %vm668 = vcmp.eq.f32.partialorder %v667, 8.507059e+37
    %v669 = vand.u32 %v430, 2147483648
    %v670 = vor.u32 1.1754944e-38, %v669
    %v671 = vsel %vm668, %v670, %v666
    %v672 = vmul.f32 1.0, %v671
    %v673 = vrcp.pop %v431
    %v674 = vmul.f32 %v431, %v673
    %v675 = vsub.f32 1.0, %v674
    %v676 = vmul.f32 %v673, %v675
    %v677 = vadd.f32 %v673, %v676
    %vm678 = vweird.f32 %v431
    %vm679 = vweird.f32 %v673
    %vm680 = vmor %vm678, %vm679
    %v681 = vsel %vm680, %v673, %v677
    %v682 = vand.u32 2147483647, %v431
    %vm683 = vcmp.eq.f32.partialorder %v682, 8.507059e+37
    %v684 = vand.u32 %v431, 2147483648
    %v685 = vor.u32 1.1754944e-38, %v684
    %v686 = vsel %vm683, %v685, %v681
    %v687 = vmul.f32 1.0, %v686
    %v688 = vrcp.pop %v432
    %v689 = vmul.f32 %v432, %v688
    %v690 = vsub.f32 1.0, %v689
    %v691 = vmul.f32 %v688, %v690
    %v692 = vadd.f32 %v688, %v691
    %vm693 = vweird.f32 %v432
    %vm694 = vweird.f32 %v688
    %vm695 = vmor %vm693, %vm694
    %v696 = vsel %vm695, %v688, %v692
    %v697 = vand.u32 2147483647, %v432
    %vm698 = vcmp.eq.f32.partialorder %v697, 8.507059e+37
    %v699 = vand.u32 %v432, 2147483648
    %v700 = vor.u32 1.1754944e-38, %v699
    %v701 = vsel %vm698, %v700, %v696
    %v702 = vmul.f32 1.0, %v701
    %v703 = vrcp.pop %v433
    %v704 = vmul.f32 %v433, %v703
    %v705 = vsub.f32 1.0, %v704
    %v706 = vmul.f32 %v703, %v705
    %v707 = vadd.f32 %v703, %v706
    %vm708 = vweird.f32 %v433
    %vm709 = vweird.f32 %v703
    %vm710 = vmor %vm708, %vm709
    %v711 = vsel %vm710, %v703, %v707
    %v712 = vand.u32 2147483647, %v433
    %vm713 = vcmp.eq.f32.partialorder %v712, 8.507059e+37
    %v714 = vand.u32 %v433, 2147483648
    %v715 = vor.u32 1.1754944e-38, %v714
    %v716 = vsel %vm713, %v715, %v711
    %v717 = vmul.f32 1.0, %v716
    %v718 = vrcp.pop %v434
    %v719 = vmul.f32 %v434, %v718
    %v720 = vsub.f32 1.0, %v719
    %v721 = vmul.f32 %v718, %v720
    %v722 = vadd.f32 %v718, %v721
    %vm723 = vweird.f32 %v434
    %vm724 = vweird.f32 %v718
    %vm725 = vmor %vm723, %vm724
    %v726 = vsel %vm725, %v718, %v722
    %v727 = vand.u32 2147483647, %v434
    %vm728 = vcmp.eq.f32.partialorder %v727, 8.507059e+37
    %v729 = vand.u32 %v434, 2147483648
    %v730 = vor.u32 1.1754944e-38, %v729
    %v731 = vsel %vm728, %v730, %v726
    %v732 = vmul.f32 1.0, %v731
    %v733 = vrcp.pop %v435
    %v734 = vmul.f32 %v435, %v733
    %v735 = vsub.f32 1.0, %v734
    %v736 = vmul.f32 %v733, %v735
    %v737 = vadd.f32 %v733, %v736
    %vm738 = vweird.f32 %v435
    %vm739 = vweird.f32 %v733
    %vm740 = vmor %vm738, %vm739
    %v741 = vsel %vm740, %v733, %v737
    %v742 = vand.u32 2147483647, %v435
    %vm743 = vcmp.eq.f32.partialorder %v742, 8.507059e+37
    %v744 = vand.u32 %v435, 2147483648
    %v745 = vor.u32 1.1754944e-38, %v744
    %v746 = vsel %vm743, %v745, %v741
    %v747 = vmul.f32 1.0, %v746
    %v748 = vrcp.pop %v436
    %v749 = vmul.f32 %v436, %v748
    %v750 = vsub.f32 1.0, %v749
    %v751 = vmul.f32 %v748, %v750
    %v752 = vadd.f32 %v748, %v751
    %vm753 = vweird.f32 %v436
    %vm754 = vweird.f32 %v748
    %vm755 = vmor %vm753, %vm754
    %v756 = vsel %vm755, %v748, %v752
    %v757 = vand.u32 2147483647, %v436
    %vm758 = vcmp.eq.f32.partialorder %v757, 8.507059e+37
    %v759 = vand.u32 %v436, 2147483648
    %v760 = vor.u32 1.1754944e-38, %v759
    %v761 = vsel %vm758, %v760, %v756
    %v762 = vmul.f32 1.0, %v761
    %v763 = vrcp.pop %v437
    %v764 = vmul.f32 %v437, %v763
    %v765 = vsub.f32 1.0, %v764
    %v766 = vmul.f32 %v763, %v765
    %v767 = vadd.f32 %v763, %v766
    %vm768 = vweird.f32 %v437
    %vm769 = vweird.f32 %v763
    %vm770 = vmor %vm768, %vm769
    %v771 = vsel %vm770, %v763, %v767
    %v772 = vand.u32 2147483647, %v437
    %vm773 = vcmp.eq.f32.partialorder %v772, 8.507059e+37
    %v774 = vand.u32 %v437, 2147483648
    %v775 = vor.u32 1.1754944e-38, %v774
    %v776 = vsel %vm773, %v775, %v771
    %v777 = vmul.f32 1.0, %v776
    %v778 = vrcp.pop %v438
    %v779 = vmul.f32 %v438, %v778
    %v780 = vsub.f32 1.0, %v779
    %v781 = vmul.f32 %v778, %v780
    %v782 = vadd.f32 %v778, %v781
    %vm783 = vweird.f32 %v438
    %vm784 = vweird.f32 %v778
    %vm785 = vmor %vm783, %vm784
    %v786 = vsel %vm785, %v778, %v782
    %v787 = vand.u32 2147483647, %v438
    %vm788 = vcmp.eq.f32.partialorder %v787, 8.507059e+37
    %v789 = vand.u32 %v438, 2147483648
    %v790 = vor.u32 1.1754944e-38, %v789
    %v791 = vsel %vm788, %v790, %v786
    %v792 = vmul.f32 1.0, %v791
    %v793 = vrcp.pop %v439
    %v794 = vmul.f32 %v439, %v793
    %v795 = vsub.f32 1.0, %v794
    %v796 = vmul.f32 %v793, %v795
    %v797 = vadd.f32 %v793, %v796
    %vm798 = vweird.f32 %v439
    %vm799 = vweird.f32 %v793
    %vm800 = vmor %vm798, %vm799
    %v801 = vsel %vm800, %v793, %v797
    %v802 = vand.u32 2147483647, %v439
    %vm803 = vcmp.eq.f32.partialorder %v802, 8.507059e+37
    %v804 = vand.u32 %v439, 2147483648
    %v805 = vor.u32 1.1754944e-38, %v804
    %v806 = vsel %vm803, %v805, %v801
    %v807 = vmul.f32 1.0, %v806
    %v808 = vrcp.pop %v440
    %v809 = vmul.f32 %v440, %v808
    %v810 = vsub.f32 1.0, %v809
    %v811 = vmul.f32 %v808, %v810
    %v812 = vadd.f32 %v808, %v811
    %vm813 = vweird.f32 %v440
    %vm814 = vweird.f32 %v808
    %vm815 = vmor %vm813, %vm814
    %v816 = vsel %vm815, %v808, %v812
    %v817 = vand.u32 2147483647, %v440
    %vm818 = vcmp.eq.f32.partialorder %v817, 8.507059e+37
    %v819 = vand.u32 %v440, 2147483648
    %v820 = vor.u32 1.1754944e-38, %v819
    %v821 = vsel %vm818, %v820, %v816
    %v822 = vmul.f32 1.0, %v821
    %v823 = vrcp.pop %v441
    %v824 = vmul.f32 %v441, %v823
    %v825 = vsub.f32 1.0, %v824
    %v826 = vmul.f32 %v823, %v825
    %v827 = vadd.f32 %v823, %v826
    %vm828 = vweird.f32 %v441
    %vm829 = vweird.f32 %v823
    %vm830 = vmor %vm828, %vm829
    %v831 = vsel %vm830, %v823, %v827
    %v832 = vand.u32 2147483647, %v441
    %vm833 = vcmp.eq.f32.partialorder %v832, 8.507059e+37
    %v834 = vand.u32 %v441, 2147483648
    %v835 = vor.u32 1.1754944e-38, %v834
    %v836 = vsel %vm833, %v835, %v831
    %v837 = vmul.f32 1.0, %v836
    %v838 = vrcp.pop %v442
    %v839 = vmul.f32 %v442, %v838
    %v840 = vsub.f32 1.0, %v839
    %v841 = vmul.f32 %v838, %v840
    %v842 = vadd.f32 %v838, %v841
    %vm843 = vweird.f32 %v442
    %vm844 = vweird.f32 %v838
    %vm845 = vmor %vm843, %vm844
    %v846 = vsel %vm845, %v838, %v842
    %v847 = vand.u32 2147483647, %v442
    %vm848 = vcmp.eq.f32.partialorder %v847, 8.507059e+37
    %v849 = vand.u32 %v442, 2147483648
    %v850 = vor.u32 1.1754944e-38, %v849
    %v851 = vsel %vm848, %v850, %v846
    %v852 = vmul.f32 1.0, %v851
    %v853 = vrcp.pop %v443
    %v854 = vmul.f32 %v443, %v853
    %v855 = vsub.f32 1.0, %v854
    %v856 = vmul.f32 %v853, %v855
    %v857 = vadd.f32 %v853, %v856
    %vm858 = vweird.f32 %v443
    %vm859 = vweird.f32 %v853
    %vm860 = vmor %vm858, %vm859
    %v861 = vsel %vm860, %v853, %v857
    %v862 = vand.u32 2147483647, %v443
    %vm863 = vcmp.eq.f32.partialorder %v862, 8.507059e+37
    %v864 = vand.u32 %v443, 2147483648
    %v865 = vor.u32 1.1754944e-38, %v864
    %v866 = vsel %vm863, %v865, %v861
    %v867 = vmul.f32 1.0, %v866
    %v868 = vrcp.pop %v444
    %v869 = vmul.f32 %v444, %v868
    %v870 = vsub.f32 1.0, %v869
    %v871 = vmul.f32 %v868, %v870
    %v872 = vadd.f32 %v868, %v871
    %vm873 = vweird.f32 %v444
    %vm874 = vweird.f32 %v868
    %vm875 = vmor %vm873, %vm874
    %v876 = vsel %vm875, %v868, %v872
    %v877 = vand.u32 2147483647, %v444
    %vm878 = vcmp.eq.f32.partialorder %v877, 8.507059e+37
    %v879 = vand.u32 %v444, 2147483648
    %v880 = vor.u32 1.1754944e-38, %v879
    %v881 = vsel %vm878, %v880, %v876
    %v882 = vmul.f32 1.0, %v881
    %v883 = vrcp.pop %v445
    %v884 = vmul.f32 %v445, %v883
    %v885 = vsub.f32 1.0, %v884
    %v886 = vmul.f32 %v883, %v885
    %v887 = vadd.f32 %v883, %v886
    %vm888 = vweird.f32 %v445
    %vm889 = vweird.f32 %v883
    %vm890 = vmor %vm888, %vm889
    %v891 = vsel %vm890, %v883, %v887
    %v892 = vand.u32 2147483647, %v445
    %vm893 = vcmp.eq.f32.partialorder %v892, 8.507059e+37
    %v894 = vand.u32 %v445, 2147483648
    %v895 = vor.u32 1.1754944e-38, %v894
    %v896 = vsel %vm893, %v895, %v891
    %v897 = vmul.f32 1.0, %v896
    %v898 = vrcp.pop %v446
    %v899 = vmul.f32 %v446, %v898
    %v900 = vsub.f32 1.0, %v899
    %v901 = vmul.f32 %v898, %v900
    %v902 = vadd.f32 %v898, %v901
    %vm903 = vweird.f32 %v446
    %vm904 = vweird.f32 %v898
    %vm905 = vmor %vm903, %vm904
    %v906 = vsel %vm905, %v898, %v902
    %v907 = vand.u32 2147483647, %v446
    %vm908 = vcmp.eq.f32.partialorder %v907, 8.507059e+37
    %v909 = vand.u32 %v446, 2147483648
    %v910 = vor.u32 1.1754944e-38, %v909
    %v911 = vsel %vm908, %v910, %v906
    %v912 = vmul.f32 1.0, %v911
    %v913 = vrcp.pop %v447
    %v914 = vmul.f32 %v447, %v913
    %v915 = vsub.f32 1.0, %v914
    %v916 = vmul.f32 %v913, %v915
    %v917 = vadd.f32 %v913, %v916
    %vm918 = vweird.f32 %v447
    %vm919 = vweird.f32 %v913
    %vm920 = vmor %vm918, %vm919
    %v921 = vsel %vm920, %v913, %v917
    %v922 = vand.u32 2147483647, %v447
    %vm923 = vcmp.eq.f32.partialorder %v922, 8.507059e+37
    %v924 = vand.u32 %v447, 2147483648
    %v925 = vor.u32 1.1754944e-38, %v924
    %v926 = vsel %vm923, %v925, %v921
    %v927 = vmul.f32 1.0, %v926
    %v928 = vld [vmem:[%s3] sm:$0x1]
    %v930 = vperm.slane %v928, 0
    %v932 = vmul.f32 %v462, %v930
    %v933 = vmul.f32 %v477, %v930
    %v934 = vmul.f32 %v492, %v930
    %v935 = vmul.f32 %v507, %v930
    %v936 = vmul.f32 %v522, %v930
    %v937 = vmul.f32 %v537, %v930
    %v938 = vmul.f32 %v552, %v930
    %v939 = vmul.f32 %v567, %v930
    %v940 = vmul.f32 %v582, %v930
    %v941 = vmul.f32 %v597, %v930
    %v942 = vmul.f32 %v612, %v930
    %v943 = vmul.f32 %v627, %v930
    %v944 = vmul.f32 %v642, %v930
    %v945 = vmul.f32 %v657, %v930
    %v946 = vmul.f32 %v672, %v930
    %v947 = vmul.f32 %v687, %v930
    %v948 = vmul.f32 %v702, %v930
    %v949 = vmul.f32 %v717, %v930
    %v950 = vmul.f32 %v732, %v930
    %v951 = vmul.f32 %v747, %v930
    %v952 = vmul.f32 %v762, %v930
    %v953 = vmul.f32 %v777, %v930
    %v954 = vmul.f32 %v792, %v930
    %v955 = vmul.f32 %v807, %v930
    %v956 = vmul.f32 %v822, %v930
    %v957 = vmul.f32 %v837, %v930
    %v958 = vmul.f32 %v852, %v930
    %v959 = vmul.f32 %v867, %v930
    %v960 = vmul.f32 %v882, %v930
    %v961 = vmul.f32 %v897, %v930
    %v962 = vmul.f32 %v912, %v930
    %v963 = vmul.f32 %v927, %v930
    %vm964 = vcmask 261120
    %v965 = vsel %vm964, %v932, 0.0
    %966 = vadd.xlane.f32.xlu0 %v965
    %v967 = vpop.xlane.xlu0 %966
    %v968 = vsel %vm964, %v933, 0.0
    %969 = vadd.xlane.f32.xlu0 %v968
    %v970 = vpop.xlane.xlu0 %969
    %v971 = vsel %vm964, %v934, 0.0
    %972 = vadd.xlane.f32.xlu0 %v971
    %v973 = vpop.xlane.xlu0 %972
    %v974 = vsel %vm964, %v935, 0.0
    %975 = vadd.xlane.f32.xlu0 %v974
    %v976 = vpop.xlane.xlu0 %975
    %v977 = vsel %vm964, %v936, 0.0
    %978 = vadd.xlane.f32.xlu0 %v977
    %v979 = vpop.xlane.xlu0 %978
    %v980 = vsel %vm964, %v937, 0.0
    %981 = vadd.xlane.f32.xlu0 %v980
    %v982 = vpop.xlane.xlu0 %981
    %v983 = vsel %vm964, %v938, 0.0
    %984 = vadd.xlane.f32.xlu0 %v983
    %v985 = vpop.xlane.xlu0 %984
    %v986 = vsel %vm964, %v939, 0.0
    %987 = vadd.xlane.f32.xlu0 %v986
    %v988 = vpop.xlane.xlu0 %987
    %v989 = vsel %vm964, %v940, 0.0
    %990 = vadd.xlane.f32.xlu0 %v989
    %v991 = vpop.xlane.xlu0 %990
    %v992 = vsel %vm964, %v941, 0.0
    %993 = vadd.xlane.f32.xlu0 %v992
    %v994 = vpop.xlane.xlu0 %993
    %v995 = vsel %vm964, %v942, 0.0
    %996 = vadd.xlane.f32.xlu0 %v995
    %v997 = vpop.xlane.xlu0 %996
    %v998 = vsel %vm964, %v943, 0.0
    %999 = vadd.xlane.f32.xlu0 %v998
    %v1000 = vpop.xlane.xlu0 %999
    %v1001 = vsel %vm964, %v944, 0.0
    %1002 = vadd.xlane.f32.xlu0 %v1001
    %v1003 = vpop.xlane.xlu0 %1002
    %v1004 = vsel %vm964, %v945, 0.0
    %1005 = vadd.xlane.f32.xlu0 %v1004
    %v1006 = vpop.xlane.xlu0 %1005
    %v1007 = vsel %vm964, %v946, 0.0
    %1008 = vadd.xlane.f32.xlu0 %v1007
    %v1009 = vpop.xlane.xlu0 %1008
    %v1010 = vsel %vm964, %v947, 0.0
    %1011 = vadd.xlane.f32.xlu0 %v1010
    %v1012 = vpop.xlane.xlu0 %1011
    %v1013 = vsel %vm964, %v948, 0.0
    %1014 = vadd.xlane.f32.xlu0 %v1013
    %v1015 = vpop.xlane.xlu0 %1014
    %v1016 = vsel %vm964, %v949, 0.0
    %1017 = vadd.xlane.f32.xlu0 %v1016
    %v1018 = vpop.xlane.xlu0 %1017
    %v1019 = vsel %vm964, %v950, 0.0
    %1020 = vadd.xlane.f32.xlu0 %v1019
    %v1021 = vpop.xlane.xlu0 %1020
    %v1022 = vsel %vm964, %v951, 0.0
    %1023 = vadd.xlane.f32.xlu0 %v1022
    %v1024 = vpop.xlane.xlu0 %1023
    %v1025 = vsel %vm964, %v952, 0.0
    %1026 = vadd.xlane.f32.xlu0 %v1025
    %v1027 = vpop.xlane.xlu0 %1026
    %v1028 = vsel %vm964, %v953, 0.0
    %1029 = vadd.xlane.f32.xlu0 %v1028
    %v1030 = vpop.xlane.xlu0 %1029
    %v1031 = vsel %vm964, %v954, 0.0
    %1032 = vadd.xlane.f32.xlu0 %v1031
    %v1033 = vpop.xlane.xlu0 %1032
    %v1034 = vsel %vm964, %v955, 0.0
    %1035 = vadd.xlane.f32.xlu0 %v1034
    %v1036 = vpop.xlane.xlu0 %1035
    %v1037 = vsel %vm964, %v956, 0.0
    %1038 = vadd.xlane.f32.xlu0 %v1037
    %v1039 = vpop.xlane.xlu0 %1038
    %v1040 = vsel %vm964, %v957, 0.0
    %1041 = vadd.xlane.f32.xlu0 %v1040
    %v1042 = vpop.xlane.xlu0 %1041
    %v1043 = vsel %vm964, %v958, 0.0
    %1044 = vadd.xlane.f32.xlu0 %v1043
    %v1045 = vpop.xlane.xlu0 %1044
    %v1046 = vsel %vm964, %v959, 0.0
    %1047 = vadd.xlane.f32.xlu0 %v1046
    %v1048 = vpop.xlane.xlu0 %1047
    %v1049 = vsel %vm964, %v960, 0.0
    %1050 = vadd.xlane.f32.xlu0 %v1049
    %v1051 = vpop.xlane.xlu0 %1050
    %v1052 = vsel %vm964, %v961, 0.0
    %1053 = vadd.xlane.f32.xlu0 %v1052
    %v1054 = vpop.xlane.xlu0 %1053
    %v1055 = vsel %vm964, %v962, 0.0
    %1056 = vadd.xlane.f32.xlu0 %v1055
    %v1057 = vpop.xlane.xlu0 %1056
    %v1058 = vsel %vm964, %v963, 0.0
    %1059 = vadd.xlane.f32.xlu0 %v1058
    %v1060 = vpop.xlane.xlu0 %1059
    %v1061 = vtanh.pop %v967
    %v1062 = vtanh.pop %v970
    %v1063 = vtanh.pop %v973
    %v1064 = vtanh.pop %v976
    %v1065 = vtanh.pop %v979
    %v1066 = vtanh.pop %v982
    %v1067 = vtanh.pop %v985
    %v1068 = vtanh.pop %v988
    %v1069 = vtanh.pop %v991
    %v1070 = vtanh.pop %v994
    %v1071 = vtanh.pop %v997
    %v1072 = vtanh.pop %v1000
    %v1073 = vtanh.pop %v1003
    %v1074 = vtanh.pop %v1006
    %v1075 = vtanh.pop %v1009
    %v1076 = vtanh.pop %v1012
    %v1077 = vtanh.pop %v1015
    %v1078 = vtanh.pop %v1018
    %v1079 = vtanh.pop %v1021
    %v1080 = vtanh.pop %v1024
    %v1081 = vtanh.pop %v1027
    %v1082 = vtanh.pop %v1030
    %v1083 = vtanh.pop %v1033
    %v1084 = vtanh.pop %v1036
    %v1085 = vtanh.pop %v1039
    %v1086 = vtanh.pop %v1042
    %v1087 = vtanh.pop %v1045
    %v1088 = vtanh.pop %v1048
    %v1089 = vtanh.pop %v1051
    %v1090 = vtanh.pop %v1054
    %v1091 = vtanh.pop %v1057
    %v1092 = vtanh.pop %v1060
    %v1093 = vpack.c.bf16 %v1061, %v1061
    %v1094 = vpack.c.bf16 %v1062, %v1062
    %v1095 = vpack.c.bf16 %v1063, %v1063
    %v1096 = vpack.c.bf16 %v1064, %v1064
    %v1097 = vpack.c.bf16 %v1065, %v1065
    %v1098 = vpack.c.bf16 %v1066, %v1066
    %v1099 = vpack.c.bf16 %v1067, %v1067
    %v1100 = vpack.c.bf16 %v1068, %v1068
    %v1101 = vpack.c.bf16 %v1069, %v1069
    %v1102 = vpack.c.bf16 %v1070, %v1070
    %v1103 = vpack.c.bf16 %v1071, %v1071
    %v1104 = vpack.c.bf16 %v1072, %v1072
    %v1105 = vpack.c.bf16 %v1073, %v1073
    %v1106 = vpack.c.bf16 %v1074, %v1074
    %v1107 = vpack.c.bf16 %v1075, %v1075
    %v1108 = vpack.c.bf16 %v1076, %v1076
    %v1109 = vpack.c.bf16 %v1077, %v1077
    %v1110 = vpack.c.bf16 %v1078, %v1078
    %v1111 = vpack.c.bf16 %v1079, %v1079
    %v1112 = vpack.c.bf16 %v1080, %v1080
    %v1113 = vpack.c.bf16 %v1081, %v1081
    %v1114 = vpack.c.bf16 %v1082, %v1082
    %v1115 = vpack.c.bf16 %v1083, %v1083
    %v1116 = vpack.c.bf16 %v1084, %v1084
    %v1117 = vpack.c.bf16 %v1085, %v1085
    %v1118 = vpack.c.bf16 %v1086, %v1086
    %v1119 = vpack.c.bf16 %v1087, %v1087
    %v1120 = vpack.c.bf16 %v1088, %v1088
    %v1121 = vpack.c.bf16 %v1089, %v1089
    %v1122 = vpack.c.bf16 %v1090, %v1090
    %v1123 = vpack.c.bf16 %v1091, %v1091
    %v1124 = vpack.c.bf16 %v1092, %v1092
    %v1127 = vunpack.c.l.b16 %v1093
    %v1128 = vunpack.c.l.b16 %v1094
    %v1129 = vpack.c.b16 %v1128, %v1127
    %v1130 = vunpack.c.l.b16 %v1129
    %v1131 = vunpack.c.h.b16 %v1129
    %v1132 = vlaneseq
    %v1133 = vand.u32 %v1132, 127
    %v1134 = vperm.slane %v1130, %v1133
    %v1135 = vadd.s32 %v1133, 4294967288
    %v1136 = vperm.slane %v1131, %v1135
    %vm1137 = vcmask 130112
    %v1138 = vsel %vm1137, %v1136, %v1134
    %v1139 = vpack.c.b16 %v1138, %v1138
    %vm1140 = vcmask 130048
    %v1142 = vsel %vm1140, %v1139, 0
    %1144 = vmatpush.bf16.msra.mxu0 0
    %1145 = vmatpush.bf16.msra.mxu0 0
    %1146 = vmatpush.bf16.msra.mxu0 0
    %1147 = vmatpush.bf16.msra.mxu0 0
    %1148 = vmatpush.bf16.msra.mxu0 0
    %1149 = vmatpush.bf16.msra.mxu0 0
    %1150 = vmatpush.bf16.msra.mxu0 0
    %1151 = vmatpush.bf16.msra.mxu0 %v151
    %1152 = vmatmul.bf16.gmra.mxu0 %v1142
    %v1153 = vpop.f32.mrf.mxu0
    %v1154 = vadd.f32 0.0, %v1153
    %v1155 = vpop.f32.mrf.mxu0
    %1156 = vdwg.mxu0
    %v1159 = vunpack.c.l.b16 %v1095
    %v1160 = vunpack.c.l.b16 %v1096
    %v1161 = vpack.c.b16 %v1160, %v1159
    %v1162 = vunpack.c.l.b16 %v1161
    %v1163 = vunpack.c.h.b16 %v1161
    %v1164 = vperm.slane %v1162, %v1133
    %v1165 = vperm.slane %v1163, %v1135
    %v1166 = vsel %vm1137, %v1165, %v1164
    %v1167 = vpack.c.b16 %v1166, %v1166
    %v1169 = vsel %vm1140, %v1167, 0
    %1171 = vmatpush.bf16.msra.mxu0 0
    %1172 = vmatpush.bf16.msra.mxu0 0
    %1173 = vmatpush.bf16.msra.mxu0 0
    %1174 = vmatpush.bf16.msra.mxu0 0
    %1175 = vmatpush.bf16.msra.mxu0 0
    %1176 = vmatpush.bf16.msra.mxu0 0
    %1177 = vmatpush.bf16.msra.mxu0 0
    %1178 = vmatpush.bf16.msra.mxu0 %v152
    %1179 = vmatmul.bf16.gmra.mxu0 %v1169
    %v1180 = vpop.f32.mrf.mxu0
    %v1181 = vadd.f32 0.0, %v1180
    %v1182 = vpop.f32.mrf.mxu0
    %1183 = vdwg.mxu0
    %v1186 = vunpack.c.l.b16 %v1097
    %v1187 = vunpack.c.l.b16 %v1098
    %v1188 = vpack.c.b16 %v1187, %v1186
    %v1189 = vunpack.c.l.b16 %v1188
    %v1190 = vunpack.c.h.b16 %v1188
    %v1191 = vperm.slane %v1189, %v1133
    %v1192 = vperm.slane %v1190, %v1135
    %v1193 = vsel %vm1137, %v1192, %v1191
    %v1194 = vpack.c.b16 %v1193, %v1193
    %v1196 = vsel %vm1140, %v1194, 0
    %1198 = vmatpush.bf16.msra.mxu0 0
    %1199 = vmatpush.bf16.msra.mxu0 0
    %1200 = vmatpush.bf16.msra.mxu0 0
    %1201 = vmatpush.bf16.msra.mxu0 0
    %1202 = vmatpush.bf16.msra.mxu0 0
    %1203 = vmatpush.bf16.msra.mxu0 0
    %1204 = vmatpush.bf16.msra.mxu0 0
    %1205 = vmatpush.bf16.msra.mxu0 %v153
    %1206 = vmatmul.bf16.gmra.mxu0 %v1196
    %v1207 = vpop.f32.mrf.mxu0
    %v1208 = vadd.f32 0.0, %v1207
    %v1209 = vpop.f32.mrf.mxu0
    %1210 = vdwg.mxu0
    %v1213 = vunpack.c.l.b16 %v1099
    %v1214 = vunpack.c.l.b16 %v1100
    %v1215 = vpack.c.b16 %v1214, %v1213
    %v1216 = vunpack.c.l.b16 %v1215
    %v1217 = vunpack.c.h.b16 %v1215
    %v1218 = vperm.slane %v1216, %v1133
    %v1219 = vperm.slane %v1217, %v1135
    %v1220 = vsel %vm1137, %v1219, %v1218
    %v1221 = vpack.c.b16 %v1220, %v1220
    %v1223 = vsel %vm1140, %v1221, 0
    %1225 = vmatpush.bf16.msra.mxu0 0
    %1226 = vmatpush.bf16.msra.mxu0 0
    %1227 = vmatpush.bf16.msra.mxu0 0
    %1228 = vmatpush.bf16.msra.mxu0 0
    %1229 = vmatpush.bf16.msra.mxu0 0
    %1230 = vmatpush.bf16.msra.mxu0 0
    %1231 = vmatpush.bf16.msra.mxu0 0
    %1232 = vmatpush.bf16.msra.mxu0 %v154
    %1233 = vmatmul.bf16.gmra.mxu0 %v1223
    %v1234 = vpop.f32.mrf.mxu0
    %v1235 = vadd.f32 0.0, %v1234
    %v1236 = vpop.f32.mrf.mxu0
    %1237 = vdwg.mxu0
    %v1240 = vunpack.c.l.b16 %v1101
    %v1241 = vunpack.c.l.b16 %v1102
    %v1242 = vpack.c.b16 %v1241, %v1240
    %v1243 = vunpack.c.l.b16 %v1242
    %v1244 = vunpack.c.h.b16 %v1242
    %v1245 = vperm.slane %v1243, %v1133
    %v1246 = vperm.slane %v1244, %v1135
    %v1247 = vsel %vm1137, %v1246, %v1245
    %v1248 = vpack.c.b16 %v1247, %v1247
    %v1250 = vsel %vm1140, %v1248, 0
    %1252 = vmatpush.bf16.msra.mxu0 0
    %1253 = vmatpush.bf16.msra.mxu0 0
    %1254 = vmatpush.bf16.msra.mxu0 0
    %1255 = vmatpush.bf16.msra.mxu0 0
    %1256 = vmatpush.bf16.msra.mxu0 0
    %1257 = vmatpush.bf16.msra.mxu0 0
    %1258 = vmatpush.bf16.msra.mxu0 0
    %1259 = vmatpush.bf16.msra.mxu0 %v155
    %1260 = vmatmul.bf16.gmra.mxu0 %v1250
    %v1261 = vpop.f32.mrf.mxu0
    %v1262 = vadd.f32 0.0, %v1261
    %v1263 = vpop.f32.mrf.mxu0
    %1264 = vdwg.mxu0
    %v1267 = vunpack.c.l.b16 %v1103
    %v1268 = vunpack.c.l.b16 %v1104
    %v1269 = vpack.c.b16 %v1268, %v1267
    %v1270 = vunpack.c.l.b16 %v1269
    %v1271 = vunpack.c.h.b16 %v1269
    %v1272 = vperm.slane %v1270, %v1133
    %v1273 = vperm.slane %v1271, %v1135
    %v1274 = vsel %vm1137, %v1273, %v1272
    %v1275 = vpack.c.b16 %v1274, %v1274
    %v1277 = vsel %vm1140, %v1275, 0
    %1279 = vmatpush.bf16.msra.mxu0 0
    %1280 = vmatpush.bf16.msra.mxu0 0
    %1281 = vmatpush.bf16.msra.mxu0 0
    %1282 = vmatpush.bf16.msra.mxu0 0
    %1283 = vmatpush.bf16.msra.mxu0 0
    %1284 = vmatpush.bf16.msra.mxu0 0
    %1285 = vmatpush.bf16.msra.mxu0 0
    %1286 = vmatpush.bf16.msra.mxu0 %v156
    %1287 = vmatmul.bf16.gmra.mxu0 %v1277
    %v1288 = vpop.f32.mrf.mxu0
    %v1289 = vadd.f32 0.0, %v1288
    %v1290 = vpop.f32.mrf.mxu0
    %1291 = vdwg.mxu0
    %v1294 = vunpack.c.l.b16 %v1105
    %v1295 = vunpack.c.l.b16 %v1106
    %v1296 = vpack.c.b16 %v1295, %v1294
    %v1297 = vunpack.c.l.b16 %v1296
    %v1298 = vunpack.c.h.b16 %v1296
    %v1299 = vperm.slane %v1297, %v1133
    %v1300 = vperm.slane %v1298, %v1135
    %v1301 = vsel %vm1137, %v1300, %v1299
    %v1302 = vpack.c.b16 %v1301, %v1301
    %v1304 = vsel %vm1140, %v1302, 0
    %1306 = vmatpush.bf16.msra.mxu0 0
    %1307 = vmatpush.bf16.msra.mxu0 0
    %1308 = vmatpush.bf16.msra.mxu0 0
    %1309 = vmatpush.bf16.msra.mxu0 0
    %1310 = vmatpush.bf16.msra.mxu0 0
    %1311 = vmatpush.bf16.msra.mxu0 0
    %1312 = vmatpush.bf16.msra.mxu0 0
    %1313 = vmatpush.bf16.msra.mxu0 %v157
    %1314 = vmatmul.bf16.gmra.mxu0 %v1304
    %v1315 = vpop.f32.mrf.mxu0
    %v1316 = vadd.f32 0.0, %v1315
    %v1317 = vpop.f32.mrf.mxu0
    %1318 = vdwg.mxu0
    %v1321 = vunpack.c.l.b16 %v1107
    %v1322 = vunpack.c.l.b16 %v1108
    %v1323 = vpack.c.b16 %v1322, %v1321
    %v1324 = vunpack.c.l.b16 %v1323
    %v1325 = vunpack.c.h.b16 %v1323
    %v1326 = vperm.slane %v1324, %v1133
    %v1327 = vperm.slane %v1325, %v1135
    %v1328 = vsel %vm1137, %v1327, %v1326
    %v1329 = vpack.c.b16 %v1328, %v1328
    %v1331 = vsel %vm1140, %v1329, 0
    %1333 = vmatpush.bf16.msra.mxu0 0
    %1334 = vmatpush.bf16.msra.mxu0 0
    %1335 = vmatpush.bf16.msra.mxu0 0
    %1336 = vmatpush.bf16.msra.mxu0 0
    %1337 = vmatpush.bf16.msra.mxu0 0
    %1338 = vmatpush.bf16.msra.mxu0 0
    %1339 = vmatpush.bf16.msra.mxu0 0
    %1340 = vmatpush.bf16.msra.mxu0 %v158
    %1341 = vmatmul.bf16.gmra.mxu0 %v1331
    %v1342 = vpop.f32.mrf.mxu0
    %v1343 = vadd.f32 0.0, %v1342
    %v1344 = vpop.f32.mrf.mxu0
    %1345 = vdwg.mxu0
    %v1348 = vunpack.c.l.b16 %v1109
    %v1349 = vunpack.c.l.b16 %v1110
    %v1350 = vpack.c.b16 %v1349, %v1348
    %v1351 = vunpack.c.l.b16 %v1350
    %v1352 = vunpack.c.h.b16 %v1350
    %v1353 = vperm.slane %v1351, %v1133
    %v1354 = vperm.slane %v1352, %v1135
    %v1355 = vsel %vm1137, %v1354, %v1353
    %v1356 = vpack.c.b16 %v1355, %v1355
    %v1358 = vsel %vm1140, %v1356, 0
    %1360 = vmatpush.bf16.msra.mxu0 0
    %1361 = vmatpush.bf16.msra.mxu0 0
    %1362 = vmatpush.bf16.msra.mxu0 0
    %1363 = vmatpush.bf16.msra.mxu0 0
    %1364 = vmatpush.bf16.msra.mxu0 0
    %1365 = vmatpush.bf16.msra.mxu0 0
    %1366 = vmatpush.bf16.msra.mxu0 0
    %1367 = vmatpush.bf16.msra.mxu0 %v159
    %1368 = vmatmul.bf16.gmra.mxu0 %v1358
    %v1369 = vpop.f32.mrf.mxu0
    %v1370 = vadd.f32 0.0, %v1369
    %v1371 = vpop.f32.mrf.mxu0
    %1372 = vdwg.mxu0
    %v1375 = vunpack.c.l.b16 %v1111
    %v1376 = vunpack.c.l.b16 %v1112
    %v1377 = vpack.c.b16 %v1376, %v1375
    %v1378 = vunpack.c.l.b16 %v1377
    %v1379 = vunpack.c.h.b16 %v1377
    %v1380 = vperm.slane %v1378, %v1133
    %v1381 = vperm.slane %v1379, %v1135
    %v1382 = vsel %vm1137, %v1381, %v1380
    %v1383 = vpack.c.b16 %v1382, %v1382
    %v1385 = vsel %vm1140, %v1383, 0
    %1387 = vmatpush.bf16.msra.mxu0 0
    %1388 = vmatpush.bf16.msra.mxu0 0
    %1389 = vmatpush.bf16.msra.mxu0 0
    %1390 = vmatpush.bf16.msra.mxu0 0
    %1391 = vmatpush.bf16.msra.mxu0 0
    %1392 = vmatpush.bf16.msra.mxu0 0
    %1393 = vmatpush.bf16.msra.mxu0 0
    %1394 = vmatpush.bf16.msra.mxu0 %v160
    %1395 = vmatmul.bf16.gmra.mxu0 %v1385
    %v1396 = vpop.f32.mrf.mxu0
    %v1397 = vadd.f32 0.0, %v1396
    %v1398 = vpop.f32.mrf.mxu0
    %1399 = vdwg.mxu0
    %v1402 = vunpack.c.l.b16 %v1113
    %v1403 = vunpack.c.l.b16 %v1114
    %v1404 = vpack.c.b16 %v1403, %v1402
    %v1405 = vunpack.c.l.b16 %v1404
    %v1406 = vunpack.c.h.b16 %v1404
    %v1407 = vperm.slane %v1405, %v1133
    %v1408 = vperm.slane %v1406, %v1135
    %v1409 = vsel %vm1137, %v1408, %v1407
    %v1410 = vpack.c.b16 %v1409, %v1409
    %v1412 = vsel %vm1140, %v1410, 0
    %1414 = vmatpush.bf16.msra.mxu0 0
    %1415 = vmatpush.bf16.msra.mxu0 0
    %1416 = vmatpush.bf16.msra.mxu0 0
    %1417 = vmatpush.bf16.msra.mxu0 0
    %1418 = vmatpush.bf16.msra.mxu0 0
    %1419 = vmatpush.bf16.msra.mxu0 0
    %1420 = vmatpush.bf16.msra.mxu0 0
    %1421 = vmatpush.bf16.msra.mxu0 %v161
    %1422 = vmatmul.bf16.gmra.mxu0 %v1412
    %v1423 = vpop.f32.mrf.mxu0
    %v1424 = vadd.f32 0.0, %v1423
    %v1425 = vpop.f32.mrf.mxu0
    %1426 = vdwg.mxu0
    %v1429 = vunpack.c.l.b16 %v1115
    %v1430 = vunpack.c.l.b16 %v1116
    %v1431 = vpack.c.b16 %v1430, %v1429
    %v1432 = vunpack.c.l.b16 %v1431
    %v1433 = vunpack.c.h.b16 %v1431
    %v1434 = vperm.slane %v1432, %v1133
    %v1435 = vperm.slane %v1433, %v1135
    %v1436 = vsel %vm1137, %v1435, %v1434
    %v1437 = vpack.c.b16 %v1436, %v1436
    %v1439 = vsel %vm1140, %v1437, 0
    %1441 = vmatpush.bf16.msra.mxu0 0
    %1442 = vmatpush.bf16.msra.mxu0 0
    %1443 = vmatpush.bf16.msra.mxu0 0
    %1444 = vmatpush.bf16.msra.mxu0 0
    %1445 = vmatpush.bf16.msra.mxu0 0
    %1446 = vmatpush.bf16.msra.mxu0 0
    %1447 = vmatpush.bf16.msra.mxu0 0
    %1448 = vmatpush.bf16.msra.mxu0 %v162
    %1449 = vmatmul.bf16.gmra.mxu0 %v1439
    %v1450 = vpop.f32.mrf.mxu0
    %v1451 = vadd.f32 0.0, %v1450
    %v1452 = vpop.f32.mrf.mxu0
    %1453 = vdwg.mxu0
    %v1456 = vunpack.c.l.b16 %v1117
    %v1457 = vunpack.c.l.b16 %v1118
    %v1458 = vpack.c.b16 %v1457, %v1456
    %v1459 = vunpack.c.l.b16 %v1458
    %v1460 = vunpack.c.h.b16 %v1458
    %v1461 = vperm.slane %v1459, %v1133
    %v1462 = vperm.slane %v1460, %v1135
    %v1463 = vsel %vm1137, %v1462, %v1461
    %v1464 = vpack.c.b16 %v1463, %v1463
    %v1466 = vsel %vm1140, %v1464, 0
    %1468 = vmatpush.bf16.msra.mxu0 0
    %1469 = vmatpush.bf16.msra.mxu0 0
    %1470 = vmatpush.bf16.msra.mxu0 0
    %1471 = vmatpush.bf16.msra.mxu0 0
    %1472 = vmatpush.bf16.msra.mxu0 0
    %1473 = vmatpush.bf16.msra.mxu0 0
    %1474 = vmatpush.bf16.msra.mxu0 0
    %1475 = vmatpush.bf16.msra.mxu0 %v163
    %1476 = vmatmul.bf16.gmra.mxu0 %v1466
    %v1477 = vpop.f32.mrf.mxu0
    %v1478 = vadd.f32 0.0, %v1477
    %v1479 = vpop.f32.mrf.mxu0
    %1480 = vdwg.mxu0
    %v1483 = vunpack.c.l.b16 %v1119
    %v1484 = vunpack.c.l.b16 %v1120
    %v1485 = vpack.c.b16 %v1484, %v1483
    %v1486 = vunpack.c.l.b16 %v1485
    %v1487 = vunpack.c.h.b16 %v1485
    %v1488 = vperm.slane %v1486, %v1133
    %v1489 = vperm.slane %v1487, %v1135
    %v1490 = vsel %vm1137, %v1489, %v1488
    %v1491 = vpack.c.b16 %v1490, %v1490
    %v1493 = vsel %vm1140, %v1491, 0
    %1495 = vmatpush.bf16.msra.mxu0 0
    %1496 = vmatpush.bf16.msra.mxu0 0
    %1497 = vmatpush.bf16.msra.mxu0 0
    %1498 = vmatpush.bf16.msra.mxu0 0
    %1499 = vmatpush.bf16.msra.mxu0 0
    %1500 = vmatpush.bf16.msra.mxu0 0
    %1501 = vmatpush.bf16.msra.mxu0 0
    %1502 = vmatpush.bf16.msra.mxu0 %v164
    %1503 = vmatmul.bf16.gmra.mxu0 %v1493
    %v1504 = vpop.f32.mrf.mxu0
    %v1505 = vadd.f32 0.0, %v1504
    %v1506 = vpop.f32.mrf.mxu0
    %1507 = vdwg.mxu0
    %v1510 = vunpack.c.l.b16 %v1121
    %v1511 = vunpack.c.l.b16 %v1122
    %v1512 = vpack.c.b16 %v1511, %v1510
    %v1513 = vunpack.c.l.b16 %v1512
    %v1514 = vunpack.c.h.b16 %v1512
    %v1515 = vperm.slane %v1513, %v1133
    %v1516 = vperm.slane %v1514, %v1135
    %v1517 = vsel %vm1137, %v1516, %v1515
    %v1518 = vpack.c.b16 %v1517, %v1517
    %v1520 = vsel %vm1140, %v1518, 0
    %1522 = vmatpush.bf16.msra.mxu0 0
    %1523 = vmatpush.bf16.msra.mxu0 0
    %1524 = vmatpush.bf16.msra.mxu0 0
    %1525 = vmatpush.bf16.msra.mxu0 0
    %1526 = vmatpush.bf16.msra.mxu0 0
    %1527 = vmatpush.bf16.msra.mxu0 0
    %1528 = vmatpush.bf16.msra.mxu0 0
    %1529 = vmatpush.bf16.msra.mxu0 %v165
    %1530 = vmatmul.bf16.gmra.mxu0 %v1520
    %v1531 = vpop.f32.mrf.mxu0
    %v1532 = vadd.f32 0.0, %v1531
    %v1533 = vpop.f32.mrf.mxu0
    %1534 = vdwg.mxu0
    %v1537 = vunpack.c.l.b16 %v1123
    %v1538 = vunpack.c.l.b16 %v1124
    %v1539 = vpack.c.b16 %v1538, %v1537
    %v1540 = vunpack.c.l.b16 %v1539
    %v1541 = vunpack.c.h.b16 %v1539
    %v1542 = vperm.slane %v1540, %v1133
    %v1543 = vperm.slane %v1541, %v1135
    %v1544 = vsel %vm1137, %v1543, %v1542
    %v1545 = vpack.c.b16 %v1544, %v1544
    %v1547 = vsel %vm1140, %v1545, 0
    %1549 = vmatpush.bf16.msra.mxu0 0
    %1550 = vmatpush.bf16.msra.mxu0 0
    %1551 = vmatpush.bf16.msra.mxu0 0
    %1552 = vmatpush.bf16.msra.mxu0 0
    %1553 = vmatpush.bf16.msra.mxu0 0
    %1554 = vmatpush.bf16.msra.mxu0 0
    %1555 = vmatpush.bf16.msra.mxu0 0
    %1556 = vmatpush.bf16.msra.mxu0 %v166
    %1557 = vmatmul.bf16.gmra.mxu0 %v1547
    %v1558 = vpop.f32.mrf.mxu0
    %v1559 = vadd.f32 0.0, %v1558
    %v1560 = vpop.f32.mrf.mxu0
    %1561 = vdwg.mxu0
    %v1578 = vrot.slane %v1181, 7
    %vm1579 = vcmask 1041409
    %v1580 = vsel %vm1579, %v1578, %v1154
    %v1581 = vrot.slane %v1208, 6
    %vm1582 = vcmask 1042434
    %v1583 = vsel %vm1582, %v1581, %v1580
    %v1584 = vrot.slane %v1235, 5
    %vm1585 = vcmask 1043459
    %v1586 = vsel %vm1585, %v1584, %v1583
    %v1587 = vrot.slane %v1262, 4
    %vm1588 = vcmask 1044484
    %v1589 = vsel %vm1588, %v1587, %v1586
    %v1590 = vrot.slane %v1289, 3
    %vm1591 = vcmask 1045509
    %v1592 = vsel %vm1591, %v1590, %v1589
    %v1593 = vrot.slane %v1316, 2
    %vm1594 = vcmask 1046534
    %v1595 = vsel %vm1594, %v1593, %v1592
    %v1596 = vrot.slane %v1343, 1
    %vm1597 = vcmask 1047559
    %v1598 = vsel %vm1597, %v1596, %v1595
    %v1599 = vrot.slane %v1397, 7
    %v1600 = vsel %vm1579, %v1599, %v1370
    %v1601 = vrot.slane %v1424, 6
    %v1602 = vsel %vm1582, %v1601, %v1600
    %v1603 = vrot.slane %v1451, 5
    %v1604 = vsel %vm1585, %v1603, %v1602
    %v1605 = vrot.slane %v1478, 4
    %v1606 = vsel %vm1588, %v1605, %v1604
    %v1607 = vrot.slane %v1505, 3
    %v1608 = vsel %vm1591, %v1607, %v1606
    %v1609 = vrot.slane %v1532, 2
    %v1610 = vsel %vm1594, %v1609, %v1608
    %v1611 = vrot.slane %v1559, 1
    %v1612 = vsel %vm1597, %v1611, %v1610
    %1615 = vst [vmem:[#allocation5] sm:$0xff] %v1598
    %1616 = vst [vmem:[#allocation5 + $0x8] sm:$0xff] %v1612
    // Predicated region
    $region22: #{tpu_custom_call.1} parent=1 // pred_check
      _
    $region23: #{tpu_custom_call.1} parent=1 // pred_check_branch
      %1618 = sbr.rel (0) target = $region25
    $region24: #{tpu_custom_call.1} parent=1 // pred_region
      %1620 = vsyncadd [#allocation4], 0
      %s1621 = sshll.u32 [#allocation5], 4
      %s1622 = int_to_ptr.vmem [resolvable:$true] %s1621
      %s1623 = sshll.u32 %s4, 4
      %s1624 = int_to_ptr.hbm [resolvable:$true] %s1623
      %1629 = dma.vmem_to_hbm [thread:$0]  %s1622, 256, %s1624, [#allocation4], 128, 128, 8
    $region25: #{tpu_custom_call.1} parent=1 // pred_fallthru
      _
    // Predicated region
    $region26: #{tpu_custom_call.1} parent=1 // pred_check
      _
    $region27: #{tpu_custom_call.1} parent=1 // pred_check_branch
      %1631 = sbr.rel (0) target = $region29
    $region28: #{tpu_custom_call.1} parent=1 // pred_region
      %1633 = dma.done [#allocation4], 256
    $region29: #{tpu_custom_call.1} parent=1 // pred_fallthru
      _
    %1634 = vsyncpa [#allocation3], 1
    %1635 = vsyncpa [#allocation4], 1

</llo_original>
